<compile_context>
chip_gen: v7x
topology: tpu7x:2x2x1
jax: 0.10.0
libtpu: 0.0.40
codegen_flags: <defaults>
</compile_context>

<pallas_src>
import functools

import jax
import jax.numpy as jnp
from jax.experimental import pallas as pl
from jax.experimental.pallas import tpu as pltpu

_LANES = 128
_MAX_TILE_R = 2048     # 2048x128 f32 = 1 MiB per block per f32 input
_CHUNK_R = 512         # inner sub-chunk rows: bounds live f32 temps to ~2 MiB


def _num_tensorcores():
    """2 on chips with two TensorCores per device (v4 megacore / v7x), else 1."""
    try:
        kind = jax.devices()[0].device_kind.lower()
    except Exception:
        return 1
    return 2 if ("v4" in kind or "v7" in kind) else 1


_NCORES = _num_tensorcores()


def _focal_kernel(alpha, gamma, chunk, has_mask, *args):
    if has_mask:
        pred_ref, label_ref, mask_ref, sum_ref, cnt_ref = args
    else:
        pred_ref, label_ref, sum_ref = args
        mask_ref = cnt_ref = None

    # The (8,128) output block(s) are resident across the whole reduction axis
    # and are used directly as accumulators (P3 pattern).
    @pl.when(pl.program_id(1) == 0)
    def _():
        sum_ref[...] = jnp.zeros_like(sum_ref)
        if has_mask:
            cnt_ref[...] = jnp.zeros_like(cnt_ref)

    def process(r0):
        x = pred_ref[pl.ds(r0, chunk), :].astype(jnp.float32)
        y = label_ref[pl.ds(r0, chunk), :].astype(jnp.float32)

        # sigmoid + BCE-with-logits sharing a single exp(); approximate
        # reciprocal on the EUP plus one Newton step ~= full f32 precision.
        e = jnp.exp(-jnp.abs(x))
        denom = 1.0 + e
        r = pl.reciprocal(denom, approx=True)
        r = r * (2.0 - denom * r)                 # Newton refinement
        p = jnp.where(x >= 0.0, r, e * r)         # sigmoid(x)
        # log(denom) == log1p(e) up to ~1e-7 abs (e rounds away in 1+e at large
        # |x|); irrelevant for a mean loss and reuses the live denom.
        ce = jnp.maximum(x, 0.0) - x * y + jnp.log(denom)
        one_m = p + y - 2.0 * p * y               # == 1 - p_t
        if gamma == 2.0:
            loss = ce * (one_m * one_m)
        elif gamma == 1.0:
            loss = ce * one_m
        elif gamma == 0.0:
            loss = ce
        else:
            loss = ce * jnp.power(one_m, gamma)
        if alpha >= 0.0:
            loss = loss * ((1.0 - alpha) + (2.0 * alpha - 1.0) * y)
        if has_mask:
            w = mask_ref[pl.ds(r0, chunk), :].astype(jnp.float32)
            loss = loss * w                       # w is exactly 0/1
            cnt_ref[...] += jnp.sum(w.reshape(chunk // 8, 8, _LANES), axis=0)
        # (chunk,128) -> (chunk//8, 8, 128) stays inside (8,128) tiles (a view);
        # the leading-axis reduce is plain vector adds into the resident block.
        sum_ref[...] += jnp.sum(loss.reshape(chunk // 8, 8, _LANES), axis=0)

    nchunks = pred_ref.shape[0] // chunk
    if nchunks == 1:
        process(0)
    else:
        @pl.loop(0, nchunks)
        def _(i):
            process(pl.multiple_of(i * chunk, chunk))


def _focal_loss_jax(x, y, alpha, gamma):
    """Elementwise focal loss in plain JAX (used for the tiny ragged tail)."""
    x = x.astype(jnp.float32)
    y = y.astype(jnp.float32)
    p = jax.nn.sigmoid(x)
    ce = jnp.maximum(x, 0.0) - x * y + jnp.log1p(jnp.exp(-jnp.abs(x)))
    one_m = p + y - 2.0 * p * y
    if gamma == 2.0:
        loss = ce * one_m * one_m
    elif gamma == 0.0:
        loss = ce
    else:
        loss = ce * jnp.power(one_m, gamma)
    if alpha >= 0.0:
        loss = loss * ((1.0 - alpha) + (2.0 * alpha - 1.0) * y)
    return loss


def binary_segmentation_loss(pred, batch, label_indices=None, min_visibility=None,
                             alpha=-1.0, gamma=2.0):
    """JAX/Pallas equivalent of BinarySegmentationLoss.forward."""
    if isinstance(pred, dict):
        pred = pred['bev']
    label = batch['bev']

    # Glue: collapse label channels with max over each index group (plain JAX).
    if label_indices is not None:
        label = jnp.concatenate(
            [jnp.max(label[:, jnp.asarray(idx)], axis=1, keepdims=True)
             for idx in label_indices],
            axis=1,
        )

    B, C, H, W = pred.shape
    n = B * C * H * W
    alpha = float(alpha)
    gamma = float(gamma)

    pad = (-n) % _LANES
    n_padded = n + pad
    rows = n_padded // _LANES
    has_mask = min_visibility is not None

    pred_flat = pred.reshape(-1)
    label_flat = label.reshape(-1)

    mask_flat = None
    if has_mask:
        # int8 (1 B/elem) for large inputs; tiny inputs use f32 so sub-32-row
        # blocks keep the best-supported layout.
        mask_dtype = jnp.int8 if rows >= _CHUNK_R else jnp.float32
        vis = (batch['visibility'] >= min_visibility).astype(mask_dtype)   # (B,H,W)
        if C == 1:
            mask_flat = vis.reshape(-1)
        else:
            # TODO(synk): stream the (B, H*W) visibility mask at its natural
            # granularity (needs a (b*c, spatial) grid) instead of materializing
            # the C-fold broadcast.
            mask_flat = jnp.broadcast_to(vis[:, None], (B, C, H, W)).reshape(-1)

    # Misaligned (<128 elem) tail: one tiny pad.  Fill values give exactly zero
    # loss (pred=30, label=1 -> one_m rounds to 0 in f32) and zero mask weight,
    # so no in-kernel validity mask is needed anywhere.
    if pad:
        pred_flat = jnp.pad(pred_flat, (0, pad), constant_values=30.0)
        label_flat = jnp.pad(label_flat, (0, pad), constant_values=1.0)
        if has_mask:
            mask_flat = jnp.pad(mask_flat, (0, pad))

    # ---- tile / core selection -------------------------------------------------
    if rows >= _CHUNK_R:
        chunk = _CHUNK_R
        tile_r = min(_MAX_TILE_R, (rows // _CHUNK_R) * _CHUNK_R)
        if _NCORES == 2:
            # Prefer a tile whose block count splits evenly across both
            # TensorCores, keeping the ragged JAX tail under one tile.
            for cand in range(tile_r, 0, -_CHUNK_R):
                if (rows // cand) % 2 == 0:
                    tile_r = cand
                    break
    elif rows >= 8:
        tile_r = chunk = (rows // 8) * 8
    else:
        tile_r = chunk = 0          # too small for an (8,128) block: pure-JAX path

    k_sum = jnp.float32(0.0)
    k_cnt = jnp.float32(0.0)
    n_kernel = 0

    if tile_r:
        total_blocks = rows // tile_r
        ncores = _NCORES if total_blocks >= 2 else 1
        bpc = total_blocks // ncores          # exact partition: no duplicated blocks
        rows_kernel = ncores * bpc * tile_r
        n_kernel = rows_kernel * _LANES

        # Pure reshape views of the original buffers (no padded HBM copy); the
        # grid simply never indexes rows beyond rows_kernel.
        pred2d = pred_flat.reshape(rows, _LANES)
        label2d = label_flat.reshape(rows, _LANES)

        in_map = lambda c, j: (c * bpc + j, 0)
        in_spec = pl.BlockSpec((tile_r, _LANES), in_map)
        out_spec = pl.BlockSpec((8, _LANES), lambda c, j: (c, 0))
        out_struct = jax.ShapeDtypeStruct((ncores * 8, _LANES), jnp.float32)
        cparams = pltpu.CompilerParams(
            dimension_semantics=("parallel", "arbitrary"),
            vmem_limit_bytes=32 * 1024 * 1024)

        kernel = functools.partial(_focal_kernel, alpha, gamma, chunk, has_mask)
        if has_mask:
            mask2d = mask_flat.reshape(rows, _LANES)
            s, cnt = pl.pallas_call(
                kernel,
                out_shape=(out_struct, out_struct),
                grid_spec=pltpu.PrefetchScalarGridSpec(
                    num_scalar_prefetch=0,
                    grid=(ncores, bpc),
                    in_specs=[in_spec, in_spec, in_spec],
                    out_specs=(out_spec, out_spec)),
                compiler_params=cparams,
            )(pred2d, label2d, mask2d)
            k_sum = jnp.sum(s)
            k_cnt = jnp.sum(cnt)
        else:
            s = pl.pallas_call(
                kernel,
                out_shape=out_struct,
                grid_spec=pltpu.PrefetchScalarGridSpec(
                    num_scalar_prefetch=0,
                    grid=(ncores, bpc),
                    in_specs=[in_spec, in_spec],
                    out_specs=out_spec),
                compiler_params=cparams,
            )(pred2d, label2d)
            k_sum = jnp.sum(s)

    # ---- ragged tail (< ncores*tile_r rows + the <128 pad), plain JAX ----------
    t_sum = jnp.float32(0.0)
    t_cnt = jnp.float32(0.0)
    if n_kernel < n_padded:
        lt = _focal_loss_jax(pred_flat[n_kernel:], label_flat[n_kernel:], alpha, gamma)
        if has_mask:
            wt = mask_flat[n_kernel:].astype(jnp.float32)
            t_sum = jnp.sum(lt * wt)
            t_cnt = jnp.sum(wt)
        else:
            t_sum = jnp.sum(lt)

    if has_mask:
        # NOTE: zero visible pixels -> NaN, matching torch .mean() of an empty select.
        # TODO(synk): C > 1 with a visibility mask divides by C * num_visible;
        # PyTorch's `loss[mask[:, None]]` only type-checks for C == 1 (identical there).
        return (k_sum + t_sum) / (k_cnt + t_cnt)
    return (k_sum + t_sum) / jnp.float32(n)


def _reference_loss(pred, batch, label_indices, min_visibility, alpha, gamma):
    """Pure-JAX reference mirroring the PyTorch module."""
    label = batch['bev']
    if label_indices is not None:
        label = jnp.concatenate(
            [jnp.max(label[:, jnp.asarray(idx)], axis=1, keepdims=True)
             for idx in label_indices], axis=1)
    x = pred.astype(jnp.float32)
    y = label.astype(jnp.float32)
    p = jax.nn.sigmoid(x)
    ce = jnp.maximum(x, 0.0) - x * y + jnp.log1p(jnp.exp(-jnp.abs(x)))
    p_t = p * y + (1.0 - p) * (1.0 - y)
    loss = ce * (1.0 - p_t) ** gamma
    if alpha >= 0:
        loss = (alpha * y + (1.0 - alpha) * (1.0 - y)) * loss
    if min_visibility is not None:
        m = jnp.broadcast_to((batch['visibility'] >= min_visibility)[:, None], loss.shape)
        return jnp.sum(jnp.where(m, loss, 0.0)) / jnp.sum(m)
    return jnp.mean(loss)


if __name__ == "__main__":
    key = jax.random.PRNGKey(0)
    k1, k2, k3, k4, k5, k6, k7, k8 = jax.random.split(key, 8)

    # Case 1: label_indices collapse 4 classes -> 1 channel, visibility mask on.
    B, C, H, W = 2, 4, 32, 32
    bev1 = (jax.random.uniform(k2, (B, C, H, W)) > 0.7).astype(jnp.float32)
    vis1 = jax.random.randint(k3, (B, H, W), 0, 4)
    batch1 = {'bev': bev1, 'visibility': vis1}
    pred1 = jax.random.normal(k1, (B, 1, H, W), jnp.float32)
    out1 = binary_segmentation_loss(pred1, batch1, label_indices=[[0, 1, 2, 3]],
                                    min_visibility=2, alpha=0.25, gamma=2.0)
    ref1 = _reference_loss(pred1, batch1, [[0, 1, 2, 3]], 2, 0.25, 2.0)

    # Case 2: larger raw multi-channel map, no mask, alpha disabled
    # (exercises the multi-block grid and the in-kernel sub-chunk loop).
    B2, C2, H2, W2 = 2, 8, 128, 128
    bev2 = (jax.random.uniform(k5, (B2, C2, H2, W2)) > 0.7).astype(jnp.float32)
    batch2 = {'bev': bev2}
    pred2 = jax.random.normal(k4, (B2, C2, H2, W2), jnp.float32)
    out2 = binary_segmentation_loss(pred2, batch2, label_indices=None,
                                    min_visibility=None, alpha=-1.0, gamma=2.0)
    ref2 = _reference_loss(pred2, batch2, None, None, -1.0, 2.0)

    # Case 3: misaligned element count (n % 128 != 0), C > 1 with visibility mask
    # (exercises the zero-contribution pad + ragged JAX tail path).
    B3, C3, H3, W3 = 2, 3, 15, 15
    bev3 = (jax.random.uniform(k7, (B3, C3, H3, W3)) > 0.6).astype(jnp.float32)
    vis3 = jax.random.randint(k8, (B3, H3, W3), 0, 4)
    batch3 = {'bev': bev3, 'visibility': vis3}
    pred3 = jax.random.normal(k6, (B3, C3, H3, W3), jnp.float32)
    out3 = binary_segmentation_loss(pred3, batch3, label_indices=None,
                                    min_visibility=2, alpha=0.25, gamma=2.0)
    ref3 = _reference_loss(pred3, batch3, None, 2, 0.25, 2.0)

    jax.block_until_ready((out1, out2, out3))
    # 1e-4 tolerance: approx-reciprocal + Newton and log(1+e) vs log1p(e) are
    # both ~1e-7-level deviations, comfortably inside this bound.
    assert abs(float(out1) - float(ref1)) < 1e-4, (float(out1), float(ref1))
    assert abs(float(out2) - float(ref2)) < 1e-4, (float(out2), float(ref2))
    assert abs(float(out3) - float(ref3)) < 1e-4, (float(out3), float(ref3))
    print("KERNEL_OK")
</pallas_src>

<mosaic_0001>
module attributes {stable_mosaic.version = 11 : i64} {
  func.func @_focal_kernel(%arg0: i32, %arg1: i32, %arg2: memref<16x128xf32, #tpu.memory_space<vmem>>, %arg3: memref<16x128xf32, #tpu.memory_space<vmem>>, %arg4: memref<16x128xf32, #tpu.memory_space<vmem>>, %arg5: memref<8x128xf32, #tpu.memory_space<vmem>>, %arg6: memref<8x128xf32, #tpu.memory_space<vmem>>) attributes {dimension_semantics = [#tpu.dimension_semantics<parallel>, #tpu.dimension_semantics<arbitrary>], iteration_bounds = array<i64: 1, 1>, scalar_prefetch = 0 : i64, scratch_operands = 0 : i64, tpu.core_type = #tpu.core_type<tc>, window_params = [{transform_indices = @transform_0, window_bounds = array<i64: 16, 128>}, {transform_indices = @transform_1, window_bounds = array<i64: 16, 128>}, {transform_indices = @transform_2, window_bounds = array<i64: 16, 128>}, {transform_indices = @transform_3, window_bounds = array<i64: 8, 128>}, {transform_indices = @transform_4, window_bounds = array<i64: 8, 128>}]} {
    %c0_i32 = arith.constant 0 : i32
    %0 = arith.cmpi eq, %arg1, %c0_i32 : i32
    %1 = arith.extui %0 : i1 to i32
    %c0_i32_0 = arith.constant 0 : i32
    %2 = arith.cmpi ne, %1, %c0_i32_0 : i32
    scf.if %2 {
      %cst_23 = arith.constant 0.000000e+00 : f32
      %50 = vector.broadcast %cst_23 : f32 to vector<8x128xf32>
      %c0_24 = arith.constant 0 : index
      %c0_25 = arith.constant 0 : index
      %51 = vector.load %arg5[%c0_24, %c0_25] : memref<8x128xf32, #tpu.memory_space<vmem>>, vector<8x128xf32>
      tpu.vector_store %arg5[%c0_24, %c0_25], %50 {strides = array<i32>} : memref<8x128xf32, #tpu.memory_space<vmem>>, vector<8x128xf32>,
      %cst_26 = arith.constant 0.000000e+00 : f32
      %52 = vector.broadcast %cst_26 : f32 to vector<8x128xf32>
      %c0_27 = arith.constant 0 : index
      %c0_28 = arith.constant 0 : index
      %53 = vector.load %arg6[%c0_27, %c0_28] : memref<8x128xf32, #tpu.memory_space<vmem>>, vector<8x128xf32>
      tpu.vector_store %arg6[%c0_27, %c0_28], %52 {strides = array<i32>} : memref<8x128xf32, #tpu.memory_space<vmem>>, vector<8x128xf32>,
    } else {
    }
    %c0 = arith.constant 0 : index
    %c0_1 = arith.constant 0 : index
    %3 = vector.load %arg2[%c0, %c0_1] : memref<16x128xf32, #tpu.memory_space<vmem>>, vector<16x128xf32>
    %c0_2 = arith.constant 0 : index
    %c0_3 = arith.constant 0 : index
    %4 = vector.load %arg3[%c0_2, %c0_3] : memref<16x128xf32, #tpu.memory_space<vmem>>, vector<16x128xf32>
    %5 = math.absf %3 : vector<16x128xf32>
    %cst = arith.constant 0.000000e+00 : f32
    %6 = vector.broadcast %cst : f32 to vector<16x128xf32>
    %7 = arith.subf %6, %5 : vector<16x128xf32>
    %8 = math.exp %7 : vector<16x128xf32>
    %cst_4 = arith.constant 1.000000e+00 : f32
    %9 = vector.broadcast %cst_4 : f32 to vector<16x128xf32>
    %10 = arith.addf %9, %8 : vector<16x128xf32>
    %11 = tpu.reciprocal %10 {approx = true} : vector<16x128xf32> -> vector<16x128xf32>
    %12 = arith.mulf %10, %11 : vector<16x128xf32>
    %cst_5 = arith.constant 2.000000e+00 : f32
    %13 = vector.broadcast %cst_5 : f32 to vector<16x128xf32>
    %14 = arith.subf %13, %12 : vector<16x128xf32>
    %15 = arith.mulf %11, %14 : vector<16x128xf32>
    %cst_6 = arith.constant 0.000000e+00 : f32
    %16 = vector.broadcast %cst_6 : f32 to vector<16x128xf32>
    %17 = arith.cmpf oge, %3, %16 : vector<16x128xf32>
    %18 = arith.mulf %8, %15 : vector<16x128xf32>
    %19 = arith.select %17, %15, %18 : vector<16x128xi1>, vector<16x128xf32>
    %cst_7 = arith.constant 0.000000e+00 : f32
    %20 = vector.broadcast %cst_7 : f32 to vector<16x128xf32>
    %21 = arith.maximumf %3, %20 : vector<16x128xf32>
    %22 = arith.mulf %3, %4 : vector<16x128xf32>
    %23 = arith.subf %21, %22 : vector<16x128xf32>
    %24 = math.log %10 : vector<16x128xf32>
    %25 = arith.addf %23, %24 : vector<16x128xf32>
    %26 = arith.addf %19, %4 : vector<16x128xf32>
    %cst_8 = arith.constant 2.000000e+00 : f32
    %27 = vector.broadcast %cst_8 : f32 to vector<16x128xf32>
    %28 = arith.mulf %27, %19 : vector<16x128xf32>
    %29 = arith.mulf %28, %4 : vector<16x128xf32>
    %30 = arith.subf %26, %29 : vector<16x128xf32>
    %31 = arith.mulf %30, %30 : vector<16x128xf32>
    %32 = arith.mulf %25, %31 : vector<16x128xf32>
    %cst_9 = arith.constant -5.000000e-01 : f32
    %33 = vector.broadcast %cst_9 : f32 to vector<16x128xf32>
    %34 = arith.mulf %33, %4 : vector<16x128xf32>
    %cst_10 = arith.constant 7.500000e-01 : f32
    %35 = vector.broadcast %cst_10 : f32 to vector<16x128xf32>
    %36 = arith.addf %35, %34 : vector<16x128xf32>
    %37 = arith.mulf %32, %36 : vector<16x128xf32>
    %c0_11 = arith.constant 0 : index
    %c0_12 = arith.constant 0 : index
    %38 = vector.load %arg4[%c0_11, %c0_12] : memref<16x128xf32, #tpu.memory_space<vmem>>, vector<16x128xf32>
    %39 = arith.mulf %37, %38 : vector<16x128xf32>
    %c0_13 = arith.constant 0 : index
    %c0_14 = arith.constant 0 : index
    %40 = vector.load %arg6[%c0_13, %c0_14] : memref<8x128xf32, #tpu.memory_space<vmem>>, vector<8x128xf32>
    %41 = vector.shape_cast %38 : vector<16x128xf32> to vector<2x8x128xf32>
    %cst_15 = arith.constant dense<0.000000e+00> : vector<8x128xf32>
    %42 = vector.multi_reduction <add>, %41, %cst_15 [0] : vector<2x8x128xf32> to vector<8x128xf32>
    %43 = arith.addf %40, %42 : vector<8x128xf32>
    %c0_16 = arith.constant 0 : index
    %c0_17 = arith.constant 0 : index
    %44 = vector.load %arg6[%c0_16, %c0_17] : memref<8x128xf32, #tpu.memory_space<vmem>>, vector<8x128xf32>
    tpu.vector_store %arg6[%c0_16, %c0_17], %43 {strides = array<i32>} : memref<8x128xf32, #tpu.memory_space<vmem>>, vector<8x128xf32>,
    %c0_18 = arith.constant 0 : index
    %c0_19 = arith.constant 0 : index
    %45 = vector.load %arg5[%c0_18, %c0_19] : memref<8x128xf32, #tpu.memory_space<vmem>>, vector<8x128xf32>
    %46 = vector.shape_cast %39 : vector<16x128xf32> to vector<2x8x128xf32>
    %cst_20 = arith.constant dense<0.000000e+00> : vector<8x128xf32>
    %47 = vector.multi_reduction <add>, %46, %cst_20 [0] : vector<2x8x128xf32> to vector<8x128xf32>
    %48 = arith.addf %45, %47 : vector<8x128xf32>
    %c0_21 = arith.constant 0 : index
    %c0_22 = arith.constant 0 : index
    %49 = vector.load %arg5[%c0_21, %c0_22] : memref<8x128xf32, #tpu.memory_space<vmem>>, vector<8x128xf32>
    tpu.vector_store %arg5[%c0_21, %c0_22], %48 {strides = array<i32>} : memref<8x128xf32, #tpu.memory_space<vmem>>, vector<8x128xf32>,
    return
  }
  func.func @transform_0(%arg0: i32, %arg1: i32) -> (i32, i32) {
    %c1_i32 = arith.constant 1 : i32
    %0 = arith.muli %arg0, %c1_i32 : i32
    %1 = arith.addi %0, %arg1 : i32
    %c0_i32 = arith.constant 0 : i32
    %c0_i32_0 = arith.constant 0 : i32
    return %1, %c0_i32 : i32, i32
  }
  func.func @transform_1(%arg0: i32, %arg1: i32) -> (i32, i32) {
    %c1_i32 = arith.constant 1 : i32
    %0 = arith.muli %arg0, %c1_i32 : i32
    %1 = arith.addi %0, %arg1 : i32
    %c0_i32 = arith.constant 0 : i32
    %c0_i32_0 = arith.constant 0 : i32
    return %1, %c0_i32 : i32, i32
  }
  func.func @transform_2(%arg0: i32, %arg1: i32) -> (i32, i32) {
    %c1_i32 = arith.constant 1 : i32
    %0 = arith.muli %arg0, %c1_i32 : i32
    %1 = arith.addi %0, %arg1 : i32
    %c0_i32 = arith.constant 0 : i32
    %c0_i32_0 = arith.constant 0 : i32
    return %1, %c0_i32 : i32, i32
  }
  func.func @transform_3(%arg0: i32, %arg1: i32) -> (i32, i32) {
    %c0_i32 = arith.constant 0 : i32
    %c0_i32_0 = arith.constant 0 : i32
    return %arg0, %c0_i32 : i32, i32
  }
  func.func @transform_4(%arg0: i32, %arg1: i32) -> (i32, i32) {
    %c0_i32 = arith.constant 0 : i32
    %c0_i32_0 = arith.constant 0 : i32
    return %arg0, %c0_i32 : i32, i32
  }
}

</mosaic_0001>

<llo_original>
// kernel: tpu_custom_call.1
$region0: #{tpu_custom_call.1}
  #allocation0 [shape = 'u32[]', space=smem, size = 0x4, offset = 0x4, fixed_abs, tag = 'smem constant byte address 0x4 - core index']
  #allocation1 [shape = 'u32[144,128]{1,0:T(1,128)}', space=vmem, size = 0x12000, scoped, tag = 'internal scratch']
  %s0 = inlined_call_operand.hbm [shape: f32[16,128], index: 0, kind: input, shape index: {}]
  %s1 = inlined_call_operand.hbm [shape: f32[16,128], index: 1, kind: input, shape index: {}]
  %s2 = inlined_call_operand.hbm [shape: f32[16,128], index: 2, kind: input, shape index: {}]
  %s3 = inlined_call_operand.hbm [shape: f32[8,128], index: 3, kind: output, shape index: {0}]
  %s4 = inlined_call_operand.hbm [shape: f32[8,128], index: 4, kind: output, shape index: {1}]
  %5 = xla_tuple %s3, %s4
  %s6 = sld [smem:[#allocation0]]
  $region46: #{tpu_custom_call.1} parent=0
    _
  %s8 = ssub.s32 1, %s6
  %s9 = scalar_select 0, %s8, %s6
  $region1: #{tpu_custom_call.1} parent=0
    #allocation2 [shape = 'u8[8192]{0}', space=vmem, size = 0x2000, scoped, tag = 'input window, operand 0, single buffered']
    #allocation3 [shape = 's32[1]{0}', space=sflag, size = 0x4, scoped, tag = 'scoped memory for tpu_custom_call.1']
    #allocation4 [shape = 's32[1]{0}', space=sflag, size = 0x4, scoped, tag = 'scoped memory for tpu_custom_call.1']
    #allocation5 [shape = 'u8[8192]{0}', space=vmem, size = 0x2000, scoped, tag = 'input window, operand 1, single buffered']
    #allocation6 [shape = 's32[1]{0}', space=sflag, size = 0x4, scoped, tag = 'scoped memory for tpu_custom_call.1']
    #allocation7 [shape = 'u8[8192]{0}', space=vmem, size = 0x2000, scoped, tag = 'input window, operand 2, single buffered']
    #allocation8 [shape = 'u8[4096]{0}', space=vmem, size = 0x1000, scoped, tag = 'output window, operand 0, single buffered']
    #allocation9 [shape = 'u8[4096]{0}', space=vmem, size = 0x1000, scoped, tag = 'output window, operand 1, single buffered']
    #allocation10 [shape = 's32[1]{0}', space=sflag, size = 0x4, scoped, tag = 'scoped memory for tpu_custom_call.1']
    %10 = vsyncpa [#allocation3], 0
    %11 = vsyncpa [#allocation6], 0
    %12 = vsyncpa [#allocation4], 0
    %13 = vsyncpa [#allocation10], 0
    // Predicated region
    $region2: #{tpu_custom_call.1} parent=1 // pred_check
      _
    $region3: #{tpu_custom_call.1} parent=1 // pred_check_branch
      %15 = sbr.rel (0) target = $region5
    $region4: #{tpu_custom_call.1} parent=1 // pred_region
      %s16 = sadd.s32 0, 0
      %s17 = smul.u32 2, %s16
      %s19 = ssub.s32 256, 256
      %20 = vsyncadd [#allocation3], %s19
      %s21 = smul.addr %s17, 128
      %s22 = scalar_lea.hbm %s0, %s21
      %s23 = sshll.u32 [#allocation2], 4
      %s24 = int_to_ptr.vmem [resolvable:$true] %s23
      %29 = dma.hbm_to_vmem [thread:$0]  %s22, 256, %s24, [#allocation3], 128, 128, 8
    $region5: #{tpu_custom_call.1} parent=1 // pred_fallthru
      _
    // Predicated region
    $region6: #{tpu_custom_call.1} parent=1 // pred_check
      _
    $region7: #{tpu_custom_call.1} parent=1 // pred_check_branch
      %31 = sbr.rel (0) target = $region9
    $region8: #{tpu_custom_call.1} parent=1 // pred_region
      %s32 = sadd.s32 0, 0
      %s33 = smul.u32 2, %s32
      %s35 = ssub.s32 256, 256
      %36 = vsyncadd [#allocation6], %s35
      %s37 = smul.addr %s33, 128
      %s38 = scalar_lea.hbm %s1, %s37
      %s39 = sshll.u32 [#allocation5], 4
      %s40 = int_to_ptr.vmem [resolvable:$true] %s39
      %45 = dma.hbm_to_vmem [thread:$0]  %s38, 256, %s40, [#allocation6], 128, 128, 8
    $region9: #{tpu_custom_call.1} parent=1 // pred_fallthru
      _
    // Predicated region
    $region10: #{tpu_custom_call.1} parent=1 // pred_check
      _
    $region11: #{tpu_custom_call.1} parent=1 // pred_check_branch
      %47 = sbr.rel (0) target = $region13
    $region12: #{tpu_custom_call.1} parent=1 // pred_region
      %s48 = sadd.s32 0, 0
      %s49 = smul.u32 2, %s48
      %s51 = ssub.s32 256, 256
      %52 = vsyncadd [#allocation6], %s51
      %s53 = smul.addr %s49, 128
      %s54 = scalar_lea.hbm %s2, %s53
      %s55 = sshll.u32 [#allocation7], 4
      %s56 = int_to_ptr.vmem [resolvable:$true] %s55
      %61 = dma.hbm_to_vmem [thread:$0]  %s54, 256, %s56, [#allocation6], 128, 128, 8
    $region13: #{tpu_custom_call.1} parent=1 // pred_fallthru
      _
    // Predicated region
    $region14: #{tpu_custom_call.1} parent=1 // pred_check
      _
    $region15: #{tpu_custom_call.1} parent=1 // pred_check_branch
      %63 = sbr.rel (0) target = $region17
    $region16: #{tpu_custom_call.1} parent=1 // pred_region
      %64 = dma.done [#allocation3], 256
    $region17: #{tpu_custom_call.1} parent=1 // pred_fallthru
      _
    // Predicated region
    $region18: #{tpu_custom_call.1} parent=1 // pred_check
      _
    $region19: #{tpu_custom_call.1} parent=1 // pred_check_branch
      %66 = sbr.rel (0) target = $region21
    $region20: #{tpu_custom_call.1} parent=1 // pred_region
      %67 = dma.done [#allocation6], 256
    $region21: #{tpu_custom_call.1} parent=1 // pred_fallthru
      _
    // Predicated region
    $region22: #{tpu_custom_call.1} parent=1 // pred_check
      _
    $region23: #{tpu_custom_call.1} parent=1 // pred_check_branch
      %69 = sbr.rel (0) target = $region25
    $region24: #{tpu_custom_call.1} parent=1 // pred_region
      %70 = dma.done [#allocation6], 256
    $region25: #{tpu_custom_call.1} parent=1 // pred_fallthru
      _
    %s71 = sadd.s32 0, 0
    %s72 = smul.u32 2, %s71
    %s73 = sadd.s32 0, 0
    %s74 = smul.u32 2, %s73
    %s75 = sadd.s32 0, 0
    %s76 = smul.u32 2, %s75
    %p77 = scmp.eq.s32.totalorder 0, 0
    // Predicated region
    $region26: #{tpu_custom_call.1} parent=1 // pred_check
      %p78 = pneg %p77
    $region27: #{tpu_custom_call.1} parent=1 // pred_check_branch
      %80 = sbr.rel (%p78) target = $region29
    $region28: #{tpu_custom_call.1} parent=1 // pred_region
      %81 = vst [vmem:[#allocation8] sm:$0xff] 0.0
      %82 = vst [vmem:[#allocation9] sm:$0xff] 0.0
    $region29: #{tpu_custom_call.1} parent=1 // pred_fallthru
      _
    %v83 = vld [vmem:[#allocation2] sm:$0xff]
    %v84 = vld [vmem:[#allocation2 + $0x8] sm:$0xff]
    %v85 = vld [vmem:[#allocation5] sm:$0xff]
    %v86 = vld [vmem:[#allocation5 + $0x8] sm:$0xff]
    %v87 = vand.u32 2147483647, %v83
    %v88 = vand.u32 2147483647, %v84
    %v89 = vsub.f32 0.0, %v87
    %v90 = vsub.f32 0.0, %v88
    %v91 = vmul.f32 %v89, 1.442695
    %v92 = vpow.pop %v91
    %v93 = vmul.f32 %v90, 1.442695
    %v94 = vpow.pop %v93
    %v95 = vadd.f32 %v92, 1.0
    %v96 = vadd.f32 %v94, 1.0
    %v97 = vrcp.pop %v95
    %v98 = vrcp.pop %v96
    %v99 = vmul.f32 %v95, %v97
    %v100 = vmul.f32 %v96, %v98
    %v101 = vsub.f32 2.0, %v99
    %v102 = vsub.f32 2.0, %v100
    %v103 = vmul.f32 %v97, %v101
    %v104 = vmul.f32 %v98, %v102
    %vm105 = vcmp.ge.f32.partialorder %v83, 0.0
    %vm106 = vcmp.ge.f32.partialorder %v84, 0.0
    %v107 = vmul.f32 %v92, %v103
    %v108 = vmul.f32 %v94, %v104
    %v109 = vsel %vm105, %v103, %v107
    %v110 = vsel %vm106, %v104, %v108
    %v111 = vmax.f32 %v83, 0.0
    %v112 = vmax.f32 %v84, 0.0
    %v113 = vmul.f32 %v83, %v85
    %v114 = vmul.f32 %v84, %v86
    %v115 = vsub.f32 %v111, %v113
    %v116 = vsub.f32 %v112, %v114
    %v117 = vlog2.pop %v95
    %v118 = vmul.f32 %v117, 0.6931472
    %v119 = vlog2.pop %v96
    %v120 = vmul.f32 %v119, 0.6931472
    %v121 = vadd.f32 %v115, %v118
    %v122 = vadd.f32 %v116, %v120
    %v123 = vadd.f32 %v109, %v85
    %v124 = vadd.f32 %v110, %v86
    %v125 = vmul.f32 %v109, 2.0
    %v126 = vmul.f32 %v110, 2.0
    %v127 = vmul.f32 %v125, %v85
    %v128 = vmul.f32 %v126, %v86
    %v129 = vsub.f32 %v123, %v127
    %v130 = vsub.f32 %v124, %v128
    %v131 = vmul.f32 %v129, %v129
    %v132 = vmul.f32 %v130, %v130
    %v133 = vmul.f32 %v121, %v131
    %v134 = vmul.f32 %v122, %v132
    %v135 = vmul.f32 %v85, -0.5
    %v136 = vmul.f32 %v86, -0.5
    %v137 = vadd.f32 %v135, 0.75
    %v138 = vadd.f32 %v136, 0.75
    %v139 = vmul.f32 %v133, %v137
    %v140 = vmul.f32 %v134, %v138
    %v141 = vld [vmem:[#allocation7] sm:$0xff]
    %v142 = vld [vmem:[#allocation7 + $0x8] sm:$0xff]
    %v143 = vmul.f32 %v139, %v141
    %v144 = vmul.f32 %v140, %v142
    %v145 = vld [vmem:[#allocation9] sm:$0xff]
    %v146 = vadd.f32 %v141, %v142
    %v147 = vadd.f32 %v145, %v146
    %148 = vst [vmem:[#allocation9] sm:$0xff] %v147
    %v149 = vld [vmem:[#allocation8] sm:$0xff]
    %v150 = vadd.f32 %v143, %v144
    %v151 = vadd.f32 %v149, %v150
    %152 = vst [vmem:[#allocation8] sm:$0xff] %v151
    // Predicated region
    $region30: #{tpu_custom_call.1} parent=1 // pred_check
      _
    $region31: #{tpu_custom_call.1} parent=1 // pred_check_branch
      %154 = sbr.rel (0) target = $region33
    $region32: #{tpu_custom_call.1} parent=1 // pred_region
      %s156 = ssub.s32 128, 128
      %157 = vsyncadd [#allocation4], %s156
      %s159 = sshll.u32 [#allocation8], 4
      %s160 = int_to_ptr.vmem [resolvable:$true] %s159
      %162 = dma.vmem_to_hbm [thread:$0]  %s160, 128, %s3, [#allocation4]
    $region33: #{tpu_custom_call.1} parent=1 // pred_fallthru
      _
    // Predicated region
    $region34: #{tpu_custom_call.1} parent=1 // pred_check
      _
    $region35: #{tpu_custom_call.1} parent=1 // pred_check_branch
      %164 = sbr.rel (0) target = $region37
    $region36: #{tpu_custom_call.1} parent=1 // pred_region
      %s166 = ssub.s32 128, 128
      %167 = vsyncadd [#allocation10], %s166
      %s169 = sshll.u32 [#allocation9], 4
      %s170 = int_to_ptr.vmem [resolvable:$true] %s169
      %172 = dma.vmem_to_hbm [thread:$0]  %s170, 128, %s4, [#allocation10]
    $region37: #{tpu_custom_call.1} parent=1 // pred_fallthru
      _
    // Predicated region
    $region38: #{tpu_custom_call.1} parent=1 // pred_check
      _
    $region39: #{tpu_custom_call.1} parent=1 // pred_check_branch
      %174 = sbr.rel (0) target = $region41
    $region40: #{tpu_custom_call.1} parent=1 // pred_region
      %175 = dma.done [#allocation4], 128
    $region41: #{tpu_custom_call.1} parent=1 // pred_fallthru
      _
    // Predicated region
    $region42: #{tpu_custom_call.1} parent=1 // pred_check
      _
    $region43: #{tpu_custom_call.1} parent=1 // pred_check_branch
      %177 = sbr.rel (0) target = $region45
    $region44: #{tpu_custom_call.1} parent=1 // pred_region
      %178 = dma.done [#allocation10], 128
    $region45: #{tpu_custom_call.1} parent=1 // pred_fallthru
      _
    %179 = vsyncpa [#allocation3], 1
    %180 = vsyncpa [#allocation6], 1
    %181 = vsyncpa [#allocation4], 1
    %182 = vsyncpa [#allocation10], 1

</llo_original>
